<compile_context>
chip_gen: v7x
topology: tpu7x:2x2x1
jax: 0.10.0
libtpu: 0.0.40
codegen_flags: <defaults>
</compile_context>

<pallas_src>
import jax
import jax.numpy as jnp
from jax.experimental import pallas as pl
from jax.experimental.pallas import tpu as pltpu

_LANE = 128


# ---------------------------------------------------------------------------
# Kernel
# ---------------------------------------------------------------------------
def _gau_kernel(f_ref, w_ref, b_ref, o_ref):
    """out = sigmoid(f @ w.T + b).

    f_ref: (TM, K)   w_ref: (OC, K)   b_ref: (1, OC)   o_ref: (TM, OC)
    """
    logits = jax.lax.dot_general(
        f_ref[...], w_ref[...],
        dimension_numbers=(((1,), (1,)), ((), ())),   # contract K with K
        preferred_element_type=jnp.float32,           # f32 accumulation
    )
    logits = logits + b_ref[...].astype(jnp.float32)
    o_ref[...] = jax.nn.sigmoid(logits).astype(o_ref.dtype)


# ---------------------------------------------------------------------------
# VMEM budgeting
# ---------------------------------------------------------------------------
def _round_up(x, m):
    return ((x + m - 1) // m) * m


def _vmem_capacity_bytes():
    try:
        return int(pltpu.get_tpu_info().vmem_capacity_bytes)
    except Exception:
        return 64 * 1024 * 1024   # conservative fallback (v7x per-TC size)


def _pick_row_tile(M, K, OC, itemsize, budget_bytes, max_rows=None):
    """Largest row tile (multiple of 8) such that the double-buffered feature
    and output tiles plus the resident weight and bias fit `budget_bytes`.
    All buffers are counted with (8,128) VMEM tile padding."""
    lane_k = _round_up(K, _LANE)
    lane_oc = _round_up(OC, _LANE)
    w_bytes = 2 * _round_up(OC, 8) * lane_k * itemsize   # resident weight (x2 buf)
    b_bytes = 2 * 8 * lane_oc * itemsize                 # resident bias
    per_row = 2 * (lane_k + lane_oc) * itemsize          # dbl-buffered in + out
    fixed = w_bytes + b_bytes
    if fixed + 8 * per_row > budget_bytes:
        # TODO(synk): add a K/O grid axis (f32 accumulator + pl.when finalize)
        # for weights too large to stay resident; not needed for Linear(dim,1).
        raise ValueError(
            f"weight ({OC},{K}) does not fit the VMEM budget of "
            f"{budget_bytes} bytes; K/O tiling not implemented.")
    tm = (budget_bytes - fixed) // per_row
    tm = max(8, (tm // 8) * 8)
    tm = min(tm, 32768)                     # diminishing returns past ~32k rows
    tm = min(tm, _round_up(M, 8))
    if max_rows is not None:
        tm = min(tm, max(8, (max_rows // 8) * 8))
    return int(tm)


# ---------------------------------------------------------------------------
# Wrapper
# ---------------------------------------------------------------------------
def gated_attention_layer_u(features, W_U, b_U, *, max_rows=None):
    """sigmoid(features @ W_U.T + b_U) as a single Pallas TPU kernel.

    `max_rows` optionally caps the row tile (used by tests to force a
    multi-tile grid at small N).
    """
    N, D = features.shape
    O, D2 = W_U.shape
    assert D == D2, "feature dim mismatch"
    assert b_U.shape == (O,)

    dtype = features.dtype
    itemsize = dtype.itemsize

    # ---- D < 128: pack r rows per lane row (dense lanes, dense DMA) --------
    r = _LANE // D if (D < _LANE and _LANE % D == 0) else 1
    OC = r * O          # output columns seen by the kernel
    K = r * D           # contraction length seen by the kernel

    # Pad rows so they form whole r-packs of whole 8-sublane groups.
    M = -(-N // r)                      # ceil(N / r) packed rows
    M_pad = _round_up(M, 8)
    N_pad = M_pad * r
    if N_pad != N:
        features = jnp.pad(features, ((0, N_pad - N), (0, 0)))

    # (N_pad, D) -> (M_pad, r*D): row-major, layout-preserving (free).
    f_packed = features.reshape(M_pad, K)

    # Block-diagonal weight kron(I_r, W_U): (r*O, r*D).  No W_U.T round-trip.
    if r > 1:
        w_arr = jnp.kron(jnp.eye(r, dtype=W_U.dtype), W_U)
        b_arr = jnp.tile(b_U, r).reshape(1, OC)
    else:
        w_arr = W_U
        b_arr = b_U.reshape(1, OC)

    # ---- VMEM-aware row tile + scoped limit ---------------------------------
    vmem_cap = _vmem_capacity_bytes()
    budget = int(0.72 * vmem_cap)       # our buffers; leaves compiler headroom
    vmem_limit = int(0.90 * vmem_cap)   # raise scoped limit (v5e default 16MiB)
    tm = _pick_row_tile(M_pad, K, OC, itemsize, budget, max_rows=max_rows)
    grid = (pl.cdiv(M_pad, tm),)

    cost = pl.CostEstimate(
        flops=2 * M_pad * K * OC,
        transcendentals=M_pad * OC,
        bytes_accessed=(M_pad * K + OC * K + OC + M_pad * OC) * itemsize,
    )

    # NOTE: if a trace still shows exposed input DMA at these tile sizes, add
    # pipeline_mode=pl.Buffered(3) on the feature BlockSpec (and shrink tm).
    out_packed = pl.pallas_call(
        _gau_kernel,
        out_shape=jax.ShapeDtypeStruct((M_pad, OC), dtype),
        grid=grid,
        in_specs=[
            pl.BlockSpec((tm, K), lambda i: (i, 0)),    # streamed feature rows
            pl.BlockSpec((OC, K), lambda i: (0, 0)),    # resident weight
            pl.BlockSpec((1, OC), lambda i: (0, 0)),    # resident bias
        ],
        out_specs=pl.BlockSpec((tm, OC), lambda i: (i, 0)),
        compiler_params=pltpu.CompilerParams(
            dimension_semantics=("parallel",),          # independent row tiles
            vmem_limit_bytes=vmem_limit,
        ),
        cost_estimate=cost,
    )(f_packed, w_arr, b_arr)

    # (M_pad, r*O) -> (N_pad, O) is layout-preserving; drop padded rows.
    return out_packed.reshape(N_pad, O)[:N]


# ---------------------------------------------------------------------------
# Self-test
# ---------------------------------------------------------------------------
if __name__ == "__main__":
    key = jax.random.PRNGKey(0)

    def make(N, DIM, OUT, k):
        kf, kw, kb = jax.random.split(k, 3)
        f = jax.random.normal(kf, (N, DIM), dtype=jnp.float32)
        bound = 1.0 / (DIM ** 0.5)
        W = jax.random.uniform(kw, (OUT, DIM), minval=-bound, maxval=bound,
                               dtype=jnp.float32)
        b = jax.random.uniform(kb, (OUT,), minval=-bound, maxval=bound,
                               dtype=jnp.float32)
        return f, W, b

    def ref_fn(f, W, b):
        return jax.nn.sigmoid(f @ W.T + b)

    # Tolerances sized to cover any MXU f32 precision mode; genuine bugs
    # (packing / bias / tiling errors) produce errors orders of magnitude larger.
    def check(out, ref):
        assert out.shape == ref.shape
        assert jnp.allclose(out, ref, atol=5e-4, rtol=1e-3), "mismatch"

    k1, k2, k3, k4 = jax.random.split(key, 4)

    # 1) Module-like small-dim case: O=1, D=32 -> packed path (r=4), one tile.
    f, W, b = make(64, 32, 1, k1)
    out = jax.block_until_ready(gated_attention_layer_u(f, W, b))
    check(out, ref_fn(f, W, b))

    # 2) Same problem, forced multi-tile grid (exercises the pipelined path).
    out = jax.block_until_ready(gated_attention_layer_u(f, W, b, max_rows=8))
    check(out, ref_fn(f, W, b))

    # 3) Module default dim=512 (r=1) with N not a multiple of 8 (row padding).
    f, W, b = make(36, 512, 1, k2)
    out = jax.block_until_ready(gated_attention_layer_u(f, W, b))
    check(out, ref_fn(f, W, b))

    # 4) General O > 1 MXU path, multi-tile grid.
    f, W, b = make(64, 256, 4, k3)
    out = jax.block_until_ready(gated_attention_layer_u(f, W, b, max_rows=16))
    check(out, ref_fn(f, W, b))

    print("KERNEL_OK")
</pallas_src>

<mosaic_0001>
module attributes {stable_mosaic.version = 11 : i64} {
  func.func @_gau_kernel(%arg0: i32, %arg1: memref<16x128xf32, #tpu.memory_space<vmem>>, %arg2: memref<4x128xf32, #tpu.memory_space<vmem>>, %arg3: memref<1x4xf32, #tpu.memory_space<vmem>>, %arg4: memref<16x4xf32, #tpu.memory_space<vmem>>) attributes {dimension_semantics = [#tpu.dimension_semantics<parallel>], iteration_bounds = array<i64: 1>, scalar_prefetch = 0 : i64, scratch_operands = 0 : i64, tpu.core_type = #tpu.core_type<tc>, window_params = [{transform_indices = @transform_0, window_bounds = array<i64: 16, 128>}, {pipeline_mode = #tpu.pipeline_mode<synchronous>, transform_indices = @transform_1, window_bounds = array<i64: 4, 128>}, {pipeline_mode = #tpu.pipeline_mode<synchronous>, transform_indices = @transform_2, window_bounds = array<i64: 1, 4>}, {transform_indices = @transform_3, window_bounds = array<i64: 16, 4>}]} {
    %c0 = arith.constant 0 : index
    %c0_0 = arith.constant 0 : index
    %0 = vector.load %arg1[%c0, %c0_0] : memref<16x128xf32, #tpu.memory_space<vmem>>, vector<16x128xf32>
    %c0_1 = arith.constant 0 : index
    %c0_2 = arith.constant 0 : index
    %1 = vector.load %arg2[%c0_1, %c0_2] : memref<4x128xf32, #tpu.memory_space<vmem>>, vector<4x128xf32>
    %cst = arith.constant dense<0.000000e+00> : vector<16x4xf32>
    %2 = tpu.matmul %0, %1, %cst {dimension_numbers = #tpu.dot_dimension_numbers<[1], [1], [0], [0], [0, 0, 1, 0], [], []>} : vector<16x128xf32>, vector<4x128xf32>, vector<16x4xf32> -> vector<16x4xf32>
    %c0_3 = arith.constant 0 : index
    %c0_4 = arith.constant 0 : index
    %3 = vector.load %arg3[%c0_3, %c0_4] : memref<1x4xf32, #tpu.memory_space<vmem>>, vector<1x4xf32>
    %4 = vector.broadcast %3 : vector<1x4xf32> to vector<16x4xf32>
    %5 = arith.addf %2, %4 : vector<16x4xf32>
    %6 = arith.negf %5 : vector<16x4xf32>
    %7 = math.exp %6 : vector<16x4xf32>
    %cst_5 = arith.constant 1.000000e+00 : f32
    %8 = vector.broadcast %cst_5 : f32 to vector<16x4xf32>
    %9 = arith.addf %8, %7 : vector<16x4xf32>
    %10 = arith.divf %8, %9 : vector<16x4xf32>
    %c0_6 = arith.constant 0 : index
    %c0_7 = arith.constant 0 : index
    %11 = vector.load %arg4[%c0_6, %c0_7] : memref<16x4xf32, #tpu.memory_space<vmem>>, vector<16x4xf32>
    tpu.vector_store %arg4[%c0_6, %c0_7], %10 {strides = array<i32>} : memref<16x4xf32, #tpu.memory_space<vmem>>, vector<16x4xf32>,
    return
  }
  func.func @transform_0(%arg0: i32) -> (i32, i32) {
    %c0_i32 = arith.constant 0 : i32
    %c0_i32_0 = arith.constant 0 : i32
    return %arg0, %c0_i32 : i32, i32
  }
  func.func @transform_1(%arg0: i32) -> (i32, i32) {
    %c0_i32 = arith.constant 0 : i32
    %c0_i32_0 = arith.constant 0 : i32
    %c0_i32_1 = arith.constant 0 : i32
    return %c0_i32, %c0_i32_0 : i32, i32
  }
  func.func @transform_2(%arg0: i32) -> (i32, i32) {
    %c0_i32 = arith.constant 0 : i32
    %c0_i32_0 = arith.constant 0 : i32
    %c0_i32_1 = arith.constant 0 : i32
    return %c0_i32, %c0_i32_0 : i32, i32
  }
  func.func @transform_3(%arg0: i32) -> (i32, i32) {
    %c0_i32 = arith.constant 0 : i32
    %c0_i32_0 = arith.constant 0 : i32
    return %arg0, %c0_i32 : i32, i32
  }
}

</mosaic_0001>

<llo_original>
// kernel: tpu_custom_call.1
$region0: #{tpu_custom_call.1}
  #allocation0 [shape = 'u32[]', space=smem, size = 0x4, offset = 0x4, fixed_abs, tag = 'smem constant byte address 0x4 - core index']
  #allocation1 [shape = 'u32[144,128]{1,0:T(1,128)}', space=vmem, size = 0x12000, scoped, tag = 'internal scratch']
  %s0 = inlined_call_operand.hbm [shape: f32[16,128], index: 0, kind: input, shape index: {}]
  %s1 = inlined_call_operand.hbm [shape: f32[4,128], index: 1, kind: input, shape index: {}]
  %s2 = inlined_call_operand.vmem [shape: f32[1,4], index: 2, kind: input, shape index: {}]
  %s3 = inlined_call_operand.vmem [shape: f32[16,4], index: 3, kind: output, shape index: {}]
  %s4 = sld [smem:[#allocation0]]
  $region30: #{tpu_custom_call.1} parent=0
    _
  %s6 = ssub.s32 1, %s4
  %s7 = scalar_select 0, %s6, %s4
  $region1: #{tpu_custom_call.1} parent=0
    #allocation2 [shape = 'u8[8192]{0}', space=vmem, size = 0x2000, scoped, tag = 'input window, operand 0, single buffered']
    #allocation3 [shape = 's32[1]{0}', space=sflag, size = 0x4, scoped, tag = 'scoped memory for tpu_custom_call.1']
    #allocation4 [shape = 'u8[2048]{0}', space=vmem, size = 0x800, scoped, tag = 'input window, operand 1, single buffered']
    #allocation5 [shape = 's32[1]{0}', space=sflag, size = 0x4, scoped, tag = 'scoped memory for tpu_custom_call.1']
    %8 = vsyncpa [#allocation3], 0
    %9 = vsyncpa [#allocation5], 0
    // Predicated region
    $region2: #{tpu_custom_call.1} parent=1 // pred_check
      _
    $region3: #{tpu_custom_call.1} parent=1 // pred_check_branch
      %11 = sbr.rel (0) target = $region5
    $region4: #{tpu_custom_call.1} parent=1 // pred_region
      %s13 = ssub.s32 256, 256
      %14 = vsyncadd [#allocation3], %s13
      %s15 = sshll.u32 [#allocation2], 4
      %s16 = int_to_ptr.vmem [resolvable:$true] %s15
      %21 = dma.hbm_to_vmem [thread:$0]  %s0, 256, %s16, [#allocation3], 128, 128, 8
    $region5: #{tpu_custom_call.1} parent=1 // pred_fallthru
      _
    // Predicated region
    $region6: #{tpu_custom_call.1} parent=1 // pred_check
      _
    $region7: #{tpu_custom_call.1} parent=1 // pred_check_branch
      %23 = sbr.rel (0) target = $region9
    $region8: #{tpu_custom_call.1} parent=1 // pred_region
      %s25 = ssub.s32 64, 64
      %26 = vsyncadd [#allocation5], %s25
      %s28 = sshll.u32 [#allocation4], 4
      %s29 = int_to_ptr.vmem [resolvable:$true] %s28
      %31 = dma.hbm_to_vmem [thread:$0]  %s1, 64, %s29, [#allocation5]
    $region9: #{tpu_custom_call.1} parent=1 // pred_fallthru
      _
    // Predicated region
    $region10: #{tpu_custom_call.1} parent=1 // pred_check
      _
    $region11: #{tpu_custom_call.1} parent=1 // pred_check_branch
      %33 = sbr.rel (0) target = $region13
    $region12: #{tpu_custom_call.1} parent=1 // pred_region
      _
    $region13: #{tpu_custom_call.1} parent=1 // pred_fallthru
      _
    // Predicated region
    $region14: #{tpu_custom_call.1} parent=1 // pred_check
      _
    $region15: #{tpu_custom_call.1} parent=1 // pred_check_branch
      %35 = sbr.rel (0) target = $region17
    $region16: #{tpu_custom_call.1} parent=1 // pred_region
      %36 = dma.done [#allocation3], 256
    $region17: #{tpu_custom_call.1} parent=1 // pred_fallthru
      _
    // Predicated region
    $region18: #{tpu_custom_call.1} parent=1 // pred_check
      _
    $region19: #{tpu_custom_call.1} parent=1 // pred_check_branch
      %38 = sbr.rel (0) target = $region21
    $region20: #{tpu_custom_call.1} parent=1 // pred_region
      %39 = dma.done [#allocation5], 64
    $region21: #{tpu_custom_call.1} parent=1 // pred_fallthru
      _
    %v40 = vld [vmem:[#allocation2] sm:$0xff]
    %v41 = vld [vmem:[#allocation2 + $0x8] sm:$0xff]
    %v42 = vld [vmem:[#allocation4] sm:$0xf]
    %v43 = vld [vmem:[%s2] sm:$0x1]
    %v45 = vlaneseq
    %v46 = vshrl.u32 %v45, 7
    %v47 = vsub.s32 0, %v46
    %v48 = vrot.slane %v43, %v47
    %50 = vmatprep.subr.mxu0 0.0
    %51 = vmatpush1.xpose.msra.mxu0 %v42
    %52 = vmatprep.subr.mxu0 0.0
    %53 = vmatpush1.xpose.msra.mxu0 0.0
    %54 = vmatprep.subr.mxu0 0.0
    %55 = vmatpush1.xpose.msra.mxu0 0.0
    %56 = vmatprep.subr.mxu0 0.0
    %57 = vmatpush1.xpose.msra.mxu0 0.0
    %58 = vmatprep.subr.mxu0 0.0
    %59 = vmatpush1.xpose.msra.mxu0 0.0
    %60 = vmatprep.subr.mxu0 0.0
    %61 = vmatpush1.xpose.msra.mxu0 0.0
    %62 = vmatprep.subr.mxu0 0.0
    %63 = vmatpush1.xpose.msra.mxu0 0.0
    %64 = vmatprep.subr.mxu0 0.0
    %65 = vmatpush1.xpose.msra.mxu0 0.0
    %66 = vmatprep.subr.mxu0 0.0
    %67 = vmatpush1.xpose.msra.mxu0 0.0
    %68 = vmatprep.subr.mxu0 0.0
    %69 = vmatpush1.xpose.msra.mxu0 0.0
    %70 = vmatprep.subr.mxu0 0.0
    %71 = vmatpush1.xpose.msra.mxu0 0.0
    %72 = vmatprep.subr.mxu0 0.0
    %73 = vmatpush1.xpose.msra.mxu0 0.0
    %74 = vmatprep.subr.mxu0 0.0
    %75 = vmatpush1.xpose.msra.mxu0 0.0
    %76 = vmatprep.subr.mxu0 0.0
    %77 = vmatpush1.xpose.msra.mxu0 0.0
    %78 = vmatprep.subr.mxu0 0.0
    %79 = vmatpush1.xpose.msra.mxu0 0.0
    %80 = vmatprep.subr.mxu0 0.0
    %81 = vmatpush1.xpose.msra.mxu0 0.0
    %82 = vmatprep.subr.mxu0 0.0
    %83 = vmatpush1.xpose.msra.mxu0 0.0
    %84 = vmatprep.subr.mxu0 0.0
    %85 = vmatpush1.xpose.msra.mxu0 0.0
    %86 = vmatprep.subr.mxu0 0.0
    %87 = vmatpush1.xpose.msra.mxu0 0.0
    %88 = vmatprep.subr.mxu0 0.0
    %89 = vmatpush1.xpose.msra.mxu0 0.0
    %90 = vmatprep.subr.mxu0 0.0
    %91 = vmatpush1.xpose.msra.mxu0 0.0
    %92 = vmatprep.subr.mxu0 0.0
    %93 = vmatpush1.xpose.msra.mxu0 0.0
    %94 = vmatprep.subr.mxu0 0.0
    %95 = vmatpush1.xpose.msra.mxu0 0.0
    %96 = vmatprep.subr.mxu0 0.0
    %97 = vmatpush1.xpose.msra.mxu0 0.0
    %98 = vmatprep.subr.mxu0 0.0
    %99 = vmatpush1.xpose.msra.mxu0 0.0
    %100 = vmatprep.subr.mxu0 0.0
    %101 = vmatpush1.xpose.msra.mxu0 0.0
    %102 = vmatprep.subr.mxu0 0.0
    %103 = vmatpush1.xpose.msra.mxu0 0.0
    %104 = vmatprep.subr.mxu0 0.0
    %105 = vmatpush1.xpose.msra.mxu0 0.0
    %106 = vmatprep.subr.mxu0 0.0
    %107 = vmatpush1.xpose.msra.mxu0 0.0
    %108 = vmatprep.subr.mxu0 0.0
    %109 = vmatpush1.xpose.msra.mxu0 0.0
    %110 = vmatprep.subr.mxu0 0.0
    %111 = vmatpush1.xpose.msra.mxu0 0.0
    %112 = vmatprep.subr.mxu0 0.0
    %113 = vmatpush1.xpose.msra.mxu0 0.0
    %114 = vmatprep.mubr.f32.mxu0 0.0
    %115 = vmatmul.mubr.f32.gmra.mrb[0].mxu0 %v40
    %v116 = vpop.f32.mrb[0].mxu0
    %v117 = vadd.f32 %v48, %v116
    %v118 = vpop.f32.mrb[0].mxu0
    %119 = vmatprep.mubr.f32.mxu0 0.0
    %120 = vmatmul.mubr.f32.gmra.mrb[0].mxu0 %v41
    %v121 = vpop.f32.mrb[0].mxu0
    %v122 = vadd.f32 %v48, %v121
    %v123 = vpop.f32.mrb[0].mxu0
    %124 = vdwg.mxu0
    %v125 = vxor.u32 %v117, 2147483648
    %v126 = vxor.u32 %v122, 2147483648
    %v127 = vmul.f32 %v125, 1.442695
    %v128 = vpow.pop %v127
    %v129 = vmul.f32 %v126, 1.442695
    %v130 = vpow.pop %v129
    %v131 = vadd.f32 %v128, 1.0
    %v132 = vadd.f32 %v130, 1.0
    %v133 = vrcp.pop %v131
    %v134 = vmul.f32 1.0, %v133
    %v135 = vrcp.pop %v132
    %v136 = vmul.f32 1.0, %v135
    %vm137 = vcmask 31744
    %138 = vst.msk [vmem:[%s3] sm:$0xff] %vm137, %v134
    %139 = vst.msk [vmem:[%s3 + $0x8] sm:$0xff] %vm137, %v136
    // Predicated region
    $region22: #{tpu_custom_call.1} parent=1 // pred_check
      _
    $region23: #{tpu_custom_call.1} parent=1 // pred_check_branch
      %141 = sbr.rel (0) target = $region25
    $region24: #{tpu_custom_call.1} parent=1 // pred_region
      _
    $region25: #{tpu_custom_call.1} parent=1 // pred_fallthru
      _
    // Predicated region
    $region26: #{tpu_custom_call.1} parent=1 // pred_check
      _
    $region27: #{tpu_custom_call.1} parent=1 // pred_check_branch
      %143 = sbr.rel (0) target = $region29
    $region28: #{tpu_custom_call.1} parent=1 // pred_region
      _
    $region29: #{tpu_custom_call.1} parent=1 // pred_fallthru
      _
    %144 = vsyncpa [#allocation3], 1
    %145 = vsyncpa [#allocation5], 1

</llo_original>
